<compile_context>
chip_gen: v7x
topology: tpu7x:2x2x1
jax: 0.10.0
libtpu: 0.0.40
codegen_flags: <defaults>
</compile_context>

<pallas_src>
import math
import jax
import jax.numpy as jnp
from jax.experimental import pallas as pl
from jax.experimental.pallas import tpu as pltpu


def gcn_kernel(xt_ref, adj_ref, w_ref, o_ref):
    # xt_ref:  (TB, N, Fin)   TB graphs, node-major (pre-transposed in wrapper)
    # adj_ref: (TB, N, N)
    # w_ref:   (Fin, Fout)    shared across all grid steps
    # o_ref:   (TB, N, Fout)
    TB, N, Fin = xt_ref.shape
    Fout = w_ref.shape[1]

    # --- support = x^T @ W ----------------------------------------------
    # One folded 2-D MXU contraction over Fin with bf16 operands / f32 acc.
    # The (TB, N, Fin) -> (TB*N, Fin) fold is layout-preserving for N % 8 == 0.
    x_flat = xt_ref[...].reshape(TB * N, Fin).astype(jnp.bfloat16)
    w = w_ref[...].astype(jnp.bfloat16)
    support = jnp.dot(x_flat, w, preferred_element_type=jnp.float32)
    support = support.reshape(TB, N, Fout)                 # (TB, N, Fout) f32

    # --- softmax over last axis of adj (torch dim=2), f32 ----------------
    adj = adj_ref[...].astype(jnp.float32)
    a_max = jnp.max(adj, axis=-1, keepdims=True)
    p = jnp.exp(adj - a_max)                               # unnormalized probs
    denom = jnp.sum(p, axis=-1, keepdims=True)             # (TB, N, 1), >= 1

    # --- aggregation with deferred normalization -------------------------
    # Batched (N,N)@(N,Fout) on the MXU with bf16 operands / f32 acc, then a
    # single exact f32 row scale by 1/denom (the approx EUP reciprocal used
    # before was the source of the previous tolerance failure).
    out = jnp.einsum(
        "bmn,bno->bmo",
        p.astype(jnp.bfloat16),
        support.astype(jnp.bfloat16),
        preferred_element_type=jnp.float32,
    )                                                      # (TB, N, Fout) f32
    out = out * (1.0 / denom)                              # exact divide

    o_ref[...] = out.astype(o_ref.dtype)


def _min_grid_steps():
    """>= 4 grid steps on v7x (2 TensorCores, want >= 2 steps per core so the
    BlockSpec pipeline overlaps DMA with compute); 1 step on single-TC
    v5e/v6e (per-step overhead dominates this small kernel)."""
    try:
        kind = jax.devices()[0].device_kind.lower()
    except Exception:
        return 1
    return 4 if "v7" in kind else 1


def _pick_tb(B, N, Fin, Fout, min_steps, vmem_budget_bytes=24 * 1024 * 1024):
    """Largest batch-tile TB dividing B such that (a) the grid keeps at least
    `min_steps` steps when possible and (b) the double-buffered per-step
    blocks stay under a conservative VMEM budget (v7x: 64 MiB physical,
    32 MiB default scoped; the adj block alone is TB*N*N*4 bytes)."""
    def step_bytes(tb):
        per_graph = (N * Fin + N * N + N * Fout) * 4
        return 2 * tb * per_graph            # double-buffered in/out blocks

    divisors = [d for d in range(1, B + 1) if B % d == 0]
    fitting = [d for d in divisors if step_bytes(d) <= vmem_budget_bytes] or [1]
    pref = [d for d in fitting if B // d >= min_steps]
    return max(pref) if pref else max(fitting)


def graph_conv_net(x, adj, weight):
    """x: (B, Fin, N), adj: (B, N, N), weight: (Fin, Fout) -> (B, Fout, N)."""
    B, Fin, N = x.shape
    Fout = weight.shape[1]
    TB = _pick_tb(B, N, Fin, Fout, _min_grid_steps())

    # Layout plumbing in XLA (see header comment for the measured-tradeoff
    # alternative of contracting directly from the (B, Fin, N) layout).
    x_t = jnp.transpose(x, (0, 2, 1))  # (B, N, Fin)

    out_nf = pl.pallas_call(
        gcn_kernel,
        out_shape=jax.ShapeDtypeStruct((B, N, Fout), x.dtype),
        grid=(B // TB,),
        in_specs=[
            # Blocks tile only the batch dim; trailing block dims equal the
            # full array dims, so the (8,128) divisibility rule is satisfied.
            pl.BlockSpec((TB, N, Fin), lambda b: (b, 0, 0)),
            pl.BlockSpec((TB, N, N), lambda b: (b, 0, 0)),
            pl.BlockSpec((Fin, Fout), lambda b: (0, 0)),   # W shared per step
        ],
        out_specs=pl.BlockSpec((TB, N, Fout), lambda b: (b, 0, 0)),
        compiler_params=pltpu.CompilerParams(
            dimension_semantics=("parallel",),
        ),
    )(x_t, adj, weight)

    # Back to the PyTorch channel-first layout (fold into the consumer in a
    # real pipeline).
    return jnp.transpose(out_nf, (0, 2, 1))  # (B, Fout, N)
    # TODO(synk): bias=True path omitted — the module defaults to bias=False,
    # and the torch (1,1,Fout) bias broadcast against (B,Fout,N) is
    # shape-inconsistent as written.


def reference(x, adj, weight):
    x_t = jnp.transpose(x, (0, 2, 1))
    support = jnp.matmul(x_t, weight)
    adj_s = jax.nn.softmax(adj, axis=2)
    out = jnp.matmul(adj_s, support)
    return jnp.transpose(out, (0, 2, 1))


if __name__ == "__main__":
    B, N = 8, 16                     # batch (graphs), nodes per graph
    in_features, out_features = 32, 128   # Fout multiple of 128 -> lane-dense stores

    key = jax.random.PRNGKey(0)
    kx, ka, kw = jax.random.split(key, 3)

    x = jax.random.normal(kx, (B, in_features, N), dtype=jnp.float32)
    adj = jax.random.normal(ka, (B, N, N), dtype=jnp.float32)

    # reset_parameters(): uniform(-stdv, stdv) with stdv = 1/sqrt(out_features)
    stdv = 1.0 / math.sqrt(out_features)
    weight = jax.random.uniform(
        kw, (in_features, out_features), dtype=jnp.float32,
        minval=-stdv, maxval=stdv)
    # bias=False in the default constructor -> no bias term.

    out = graph_conv_net(x, adj, weight)
    jax.block_until_ready(out)

    ref = reference(x, adj, weight)
    assert out.shape == (B, out_features, N)
    # Softmax normalization is exact f32; remaining error comes from the
    # deliberate bf16 quantization of the MXU operands (f32 accumulation),
    # so the tolerance is sized for bf16 inputs (observed error ~1e-3).
    max_err = float(jnp.max(jnp.abs(out - ref)))
    assert jnp.allclose(out, ref, atol=2e-2, rtol=2e-2), max_err

    print("KERNEL_OK")
</pallas_src>

<mosaic_0001>
module attributes {stable_mosaic.version = 11 : i64} {
  func.func @gcn_kernel(%arg0: i32, %arg1: memref<8x16x32xf32, #tpu.memory_space<vmem>>, %arg2: memref<8x16x16xf32, #tpu.memory_space<vmem>>, %arg3: memref<32x128xf32, #tpu.memory_space<vmem>>, %arg4: memref<8x16x128xf32, #tpu.memory_space<vmem>>) attributes {dimension_semantics = [#tpu.dimension_semantics<parallel>], iteration_bounds = array<i64: 1>, scalar_prefetch = 0 : i64, scratch_operands = 0 : i64, tpu.core_type = #tpu.core_type<tc>, window_params = [{transform_indices = @transform_0, window_bounds = array<i64: 8, 16, 32>}, {transform_indices = @transform_1, window_bounds = array<i64: 8, 16, 16>}, {pipeline_mode = #tpu.pipeline_mode<synchronous>, transform_indices = @transform_2, window_bounds = array<i64: 32, 128>}, {transform_indices = @transform_3, window_bounds = array<i64: 8, 16, 128>}]} {
    %c0 = arith.constant 0 : index
    %c0_0 = arith.constant 0 : index
    %c0_1 = arith.constant 0 : index
    %0 = vector.load %arg1[%c0, %c0_0, %c0_1] : memref<8x16x32xf32, #tpu.memory_space<vmem>>, vector<8x16x32xf32>
    %1 = vector.shape_cast %0 : vector<8x16x32xf32> to vector<128x32xf32>
    %2 = arith.truncf %1 : vector<128x32xf32> to vector<128x32xbf16>
    %c0_2 = arith.constant 0 : index
    %c0_3 = arith.constant 0 : index
    %3 = vector.load %arg3[%c0_2, %c0_3] : memref<32x128xf32, #tpu.memory_space<vmem>>, vector<32x128xf32>
    %4 = arith.truncf %3 : vector<32x128xf32> to vector<32x128xbf16>
    %cst = arith.constant dense<0.000000e+00> : vector<128x128xf32>
    %5 = tpu.matmul %2, %4, %cst {dimension_numbers = #tpu.dot_dimension_numbers<[1], [0], [0], [1], [0, 0, 1, 1], [], []>} : vector<128x32xbf16>, vector<32x128xbf16>, vector<128x128xf32> -> vector<128x128xf32>
    %6 = vector.shape_cast %5 : vector<128x128xf32> to vector<8x16x128xf32>
    %c0_4 = arith.constant 0 : index
    %c0_5 = arith.constant 0 : index
    %c0_6 = arith.constant 0 : index
    %7 = vector.load %arg2[%c0_4, %c0_5, %c0_6] : memref<8x16x16xf32, #tpu.memory_space<vmem>>, vector<8x16x16xf32>
    %cst_7 = arith.constant dense<0xFF800000> : vector<8x16xf32>
    %8 = vector.multi_reduction <maximumf>, %7, %cst_7 [2] : vector<8x16x16xf32> to vector<8x16xf32>
    %9 = vector.shape_cast %8 : vector<8x16xf32> to vector<8x16x1xf32>
    %10 = vector.broadcast %9 : vector<8x16x1xf32> to vector<8x16x16xf32>
    %11 = arith.subf %7, %10 : vector<8x16x16xf32>
    %12 = math.exp %11 : vector<8x16x16xf32>
    %cst_8 = arith.constant dense<0.000000e+00> : vector<8x16xf32>
    %13 = vector.multi_reduction <add>, %12, %cst_8 [2] : vector<8x16x16xf32> to vector<8x16xf32>
    %14 = vector.shape_cast %13 : vector<8x16xf32> to vector<8x16x1xf32>
    %15 = arith.truncf %12 : vector<8x16x16xf32> to vector<8x16x16xbf16>
    %16 = arith.truncf %6 : vector<8x16x128xf32> to vector<8x16x128xbf16>
    "tpu.trace_start"() <{level = 10 : i32, message = "bmn,bno->bmo"}> : () -> ()
    %cst_9 = arith.constant dense<0.000000e+00> : vector<8x16x128xf32>
    %17 = tpu.matmul %15, %16, %cst_9 {dimension_numbers = #tpu.dot_dimension_numbers<[2], [1], [1], [2], [0, 0, 0, 1, 1, 2], [0], [0]>} : vector<8x16x16xbf16>, vector<8x16x128xbf16>, vector<8x16x128xf32> -> vector<8x16x128xf32>
    "tpu.trace_stop"() : () -> ()
    %cst_10 = arith.constant 1.000000e+00 : f32
    %18 = vector.broadcast %cst_10 : f32 to vector<8x16x1xf32>
    %19 = arith.divf %18, %14 : vector<8x16x1xf32>
    %20 = vector.broadcast %19 : vector<8x16x1xf32> to vector<8x16x128xf32>
    %21 = arith.mulf %17, %20 : vector<8x16x128xf32>
    %c0_11 = arith.constant 0 : index
    %c0_12 = arith.constant 0 : index
    %c0_13 = arith.constant 0 : index
    %22 = vector.load %arg4[%c0_11, %c0_12, %c0_13] : memref<8x16x128xf32, #tpu.memory_space<vmem>>, vector<8x16x128xf32>
    tpu.vector_store %arg4[%c0_11, %c0_12, %c0_13], %21 {strides = array<i32>} : memref<8x16x128xf32, #tpu.memory_space<vmem>>, vector<8x16x128xf32>,
    return
  }
  func.func @transform_0(%arg0: i32) -> (i32, i32, i32) {
    %c0_i32 = arith.constant 0 : i32
    %c0_i32_0 = arith.constant 0 : i32
    %c0_i32_1 = arith.constant 0 : i32
    return %arg0, %c0_i32, %c0_i32_0 : i32, i32, i32
  }
  func.func @transform_1(%arg0: i32) -> (i32, i32, i32) {
    %c0_i32 = arith.constant 0 : i32
    %c0_i32_0 = arith.constant 0 : i32
    %c0_i32_1 = arith.constant 0 : i32
    return %arg0, %c0_i32, %c0_i32_0 : i32, i32, i32
  }
  func.func @transform_2(%arg0: i32) -> (i32, i32) {
    %c0_i32 = arith.constant 0 : i32
    %c0_i32_0 = arith.constant 0 : i32
    %c0_i32_1 = arith.constant 0 : i32
    return %c0_i32, %c0_i32_0 : i32, i32
  }
  func.func @transform_3(%arg0: i32) -> (i32, i32, i32) {
    %c0_i32 = arith.constant 0 : i32
    %c0_i32_0 = arith.constant 0 : i32
    %c0_i32_1 = arith.constant 0 : i32
    return %arg0, %c0_i32, %c0_i32_0 : i32, i32, i32
  }
}

</mosaic_0001>

<llo_original>
// kernel: tpu_custom_call.1
$region0: #{tpu_custom_call.1}
  #allocation0 [shape = 'u32[]', space=smem, size = 0x4, offset = 0x4, fixed_abs, tag = 'smem constant byte address 0x4 - core index']
  #allocation1 [shape = 'u32[144,128]{1,0:T(1,128)}', space=vmem, size = 0x12000, scoped, tag = 'internal scratch']
  %s0 = inlined_call_operand.hbm [shape: f32[8,16,32], index: 0, kind: input, shape index: {}]
  %s1 = inlined_call_operand.hbm [shape: f32[8,16,16], index: 1, kind: input, shape index: {}]
  %s2 = inlined_call_operand.hbm [shape: f32[32,128], index: 2, kind: input, shape index: {}]
  %s3 = inlined_call_operand.hbm [shape: f32[8,16,128], index: 3, kind: output, shape index: {}]
  %s4 = sld [smem:[#allocation0]]
  $region34: #{tpu_custom_call.1} parent=0
    _
  %s6 = ssub.s32 1, %s4
  %s7 = scalar_select 0, %s6, %s4
  $region1: #{tpu_custom_call.1} parent=0
    #allocation2 [shape = 'u8[65536]{0}', space=vmem, size = 0x10000, scoped, tag = 'input window, operand 0, single buffered']
    #allocation3 [shape = 's32[1]{0}', space=sflag, size = 0x4, scoped, tag = 'scoped memory for tpu_custom_call.1']
    #allocation4 [shape = 's32[1]{0}', space=sflag, size = 0x4, scoped, tag = 'scoped memory for tpu_custom_call.1']
    #allocation5 [shape = 'u8[65536]{0}', space=vmem, size = 0x10000, scoped, tag = 'input window, operand 1, single buffered']
    #allocation6 [shape = 's32[1]{0}', space=sflag, size = 0x4, scoped, tag = 'scoped memory for tpu_custom_call.1']
    #allocation7 [shape = 'u8[16384]{0}', space=vmem, size = 0x4000, scoped, tag = 'input window, operand 2, single buffered']
    #allocation8 [shape = 'u8[65536]{0}', space=vmem, size = 0x10000, scoped, tag = 'output window, operand 0, single buffered']
    %8 = vsyncpa [#allocation3], 0
    %9 = vsyncpa [#allocation6], 0
    %10 = vsyncpa [#allocation4], 0
    // Predicated region
    $region2: #{tpu_custom_call.1} parent=1 // pred_check
      _
    $region3: #{tpu_custom_call.1} parent=1 // pred_check_branch
      %12 = sbr.rel (0) target = $region5
    $region4: #{tpu_custom_call.1} parent=1 // pred_region
      %s14 = ssub.s32 2048, 2048
      %15 = vsyncadd [#allocation3], %s14
      %s16 = sshll.u32 [#allocation2], 4
      %s17 = int_to_ptr.vmem [resolvable:$true] %s16
      %22 = dma.hbm_to_vmem [thread:$0]  %s0, 2048, %s17, [#allocation3], 128, 128, 8
    $region5: #{tpu_custom_call.1} parent=1 // pred_fallthru
      _
    // Predicated region
    $region6: #{tpu_custom_call.1} parent=1 // pred_check
      _
    $region7: #{tpu_custom_call.1} parent=1 // pred_check_branch
      %24 = sbr.rel (0) target = $region9
    $region8: #{tpu_custom_call.1} parent=1 // pred_region
      %s26 = ssub.s32 2048, 2048
      %27 = vsyncadd [#allocation6], %s26
      %s28 = sshll.u32 [#allocation5], 4
      %s29 = int_to_ptr.vmem [resolvable:$true] %s28
      %34 = dma.hbm_to_vmem [thread:$0]  %s1, 2048, %s29, [#allocation6], 128, 128, 8
    $region9: #{tpu_custom_call.1} parent=1 // pred_fallthru
      _
    // Predicated region
    $region10: #{tpu_custom_call.1} parent=1 // pred_check
      _
    $region11: #{tpu_custom_call.1} parent=1 // pred_check_branch
      %36 = sbr.rel (0) target = $region13
    $region12: #{tpu_custom_call.1} parent=1 // pred_region
      %s38 = ssub.s32 512, 512
      %39 = vsyncadd [#allocation6], %s38
      %s40 = sshll.u32 [#allocation7], 4
      %s41 = int_to_ptr.vmem [resolvable:$true] %s40
      %46 = dma.hbm_to_vmem [thread:$0]  %s2, 512, %s41, [#allocation6], 128, 128, 8
    $region13: #{tpu_custom_call.1} parent=1 // pred_fallthru
      _
    // Predicated region
    $region14: #{tpu_custom_call.1} parent=1 // pred_check
      _
    $region15: #{tpu_custom_call.1} parent=1 // pred_check_branch
      %48 = sbr.rel (0) target = $region17
    $region16: #{tpu_custom_call.1} parent=1 // pred_region
      %49 = dma.done [#allocation3], 2048
    $region17: #{tpu_custom_call.1} parent=1 // pred_fallthru
      _
    // Predicated region
    $region18: #{tpu_custom_call.1} parent=1 // pred_check
      _
    $region19: #{tpu_custom_call.1} parent=1 // pred_check_branch
      %51 = sbr.rel (0) target = $region21
    $region20: #{tpu_custom_call.1} parent=1 // pred_region
      %52 = dma.done [#allocation6], 2048
    $region21: #{tpu_custom_call.1} parent=1 // pred_fallthru
      _
    // Predicated region
    $region22: #{tpu_custom_call.1} parent=1 // pred_check
      _
    $region23: #{tpu_custom_call.1} parent=1 // pred_check_branch
      %54 = sbr.rel (0) target = $region25
    $region24: #{tpu_custom_call.1} parent=1 // pred_region
      %55 = dma.done [#allocation6], 512
    $region25: #{tpu_custom_call.1} parent=1 // pred_fallthru
      _
    %v57 = vld [vmem:[#allocation2] sm:$0xff]
    %v58 = vld [vmem:[#allocation2 + $0x8] sm:$0xff]
    %v59 = vld [vmem:[#allocation2 + $0x10] sm:$0xff]
    %v60 = vld [vmem:[#allocation2 + $0x18] sm:$0xff]
    %v61 = vld [vmem:[#allocation2 + $0x20] sm:$0xff]
    %v62 = vld [vmem:[#allocation2 + $0x28] sm:$0xff]
    %v63 = vld [vmem:[#allocation2 + $0x30] sm:$0xff]
    %v64 = vld [vmem:[#allocation2 + $0x38] sm:$0xff]
    %v65 = vld [vmem:[#allocation2 + $0x40] sm:$0xff]
    %v66 = vld [vmem:[#allocation2 + $0x48] sm:$0xff]
    %v67 = vld [vmem:[#allocation2 + $0x50] sm:$0xff]
    %v68 = vld [vmem:[#allocation2 + $0x58] sm:$0xff]
    %v69 = vld [vmem:[#allocation2 + $0x60] sm:$0xff]
    %v70 = vld [vmem:[#allocation2 + $0x68] sm:$0xff]
    %v71 = vld [vmem:[#allocation2 + $0x70] sm:$0xff]
    %v72 = vld [vmem:[#allocation2 + $0x78] sm:$0xff]
    %v73 = vpack.c.bf16 %v58, %v57
    %v74 = vpack.c.bf16 %v60, %v59
    %v75 = vpack.c.bf16 %v62, %v61
    %v76 = vpack.c.bf16 %v64, %v63
    %v77 = vpack.c.bf16 %v66, %v65
    %v78 = vpack.c.bf16 %v68, %v67
    %v79 = vpack.c.bf16 %v70, %v69
    %v80 = vpack.c.bf16 %v72, %v71
    %v81 = vld [vmem:[#allocation7] sm:$0xff]
    %v82 = vld [vmem:[#allocation7 + $0x8] sm:$0xff]
    %v83 = vld [vmem:[#allocation7 + $0x10] sm:$0xff]
    %v84 = vld [vmem:[#allocation7 + $0x18] sm:$0xff]
    %v85 = vpack.c.bf16 %v82, %v81
    %v86 = vpack.c.bf16 %v84, %v83
    %vm87 = vcmask 261120
    %v89 = vsel %vm87, %v73, 0
    %v92 = vsel %vm87, %v74, 0
    %v95 = vsel %vm87, %v75, 0
    %v98 = vsel %vm87, %v76, 0
    %v101 = vsel %vm87, %v77, 0
    %v104 = vsel %vm87, %v78, 0
    %v107 = vsel %vm87, %v79, 0
    %v110 = vsel %vm87, %v80, 0
    %112 = vmatprep.subr.bf16.mxu0 0
    %113 = vmatpush1.bf16.msra.mxu0 %v85
    %114 = vmatprep.subr.bf16.mxu0 0
    %115 = vmatpush1.bf16.msra.mxu0 %v86
    %116 = vmatprep.subr.bf16.mxu0 0
    %117 = vmatpush1.bf16.msra.mxu0 0
    %118 = vmatprep.subr.bf16.mxu0 0
    %119 = vmatpush1.bf16.msra.mxu0 0
    %120 = vmatprep.subr.bf16.mxu0 0
    %121 = vmatpush1.bf16.msra.mxu0 0
    %122 = vmatprep.subr.bf16.mxu0 0
    %123 = vmatpush1.bf16.msra.mxu0 0
    %124 = vmatprep.subr.bf16.mxu0 0
    %125 = vmatpush1.bf16.msra.mxu0 0
    %126 = vmatprep.subr.bf16.mxu0 0
    %127 = vmatpush1.bf16.msra.mxu0 0
    %128 = vmatprep.subr.bf16.mxu0 0
    %129 = vmatpush1.bf16.msra.mxu0 0
    %130 = vmatprep.subr.bf16.mxu0 0
    %131 = vmatpush1.bf16.msra.mxu0 0
    %132 = vmatprep.subr.bf16.mxu0 0
    %133 = vmatpush1.bf16.msra.mxu0 0
    %134 = vmatprep.subr.bf16.mxu0 0
    %135 = vmatpush1.bf16.msra.mxu0 0
    %136 = vmatprep.subr.bf16.mxu0 0
    %137 = vmatpush1.bf16.msra.mxu0 0
    %138 = vmatprep.subr.bf16.mxu0 0
    %139 = vmatpush1.bf16.msra.mxu0 0
    %140 = vmatprep.subr.bf16.mxu0 0
    %141 = vmatpush1.bf16.msra.mxu0 0
    %142 = vmatprep.subr.bf16.mxu0 0
    %143 = vmatpush1.bf16.msra.mxu0 0
    %144 = vmatprep.mubr.bf16.mxu0 0
    %145 = vmatmul.mubr.bf16.gmra.mrb[0].mxu0 %v89
    %v146 = vpop.f32.mrb[0].mxu0
    %v147 = vadd.f32 0.0, %v146
    %v148 = vpop.f32.mrb[0].mxu0
    %v149 = vpop.f32.mrb[0].mxu0
    %v150 = vadd.f32 0.0, %v149
    %v151 = vpop.f32.mrb[0].mxu0
    %152 = vmatprep.mubr.bf16.mxu0 0
    %153 = vmatmul.mubr.bf16.gmra.mrb[0].mxu0 %v92
    %v154 = vpop.f32.mrb[0].mxu0
    %v155 = vadd.f32 0.0, %v154
    %v156 = vpop.f32.mrb[0].mxu0
    %v157 = vpop.f32.mrb[0].mxu0
    %v158 = vadd.f32 0.0, %v157
    %v159 = vpop.f32.mrb[0].mxu0
    %160 = vmatprep.mubr.bf16.mxu0 0
    %161 = vmatmul.mubr.bf16.gmra.mrb[0].mxu0 %v95
    %v162 = vpop.f32.mrb[0].mxu0
    %v163 = vadd.f32 0.0, %v162
    %v164 = vpop.f32.mrb[0].mxu0
    %v165 = vpop.f32.mrb[0].mxu0
    %v166 = vadd.f32 0.0, %v165
    %v167 = vpop.f32.mrb[0].mxu0
    %168 = vmatprep.mubr.bf16.mxu0 0
    %169 = vmatmul.mubr.bf16.gmra.mrb[0].mxu0 %v98
    %v170 = vpop.f32.mrb[0].mxu0
    %v171 = vadd.f32 0.0, %v170
    %v172 = vpop.f32.mrb[0].mxu0
    %v173 = vpop.f32.mrb[0].mxu0
    %v174 = vadd.f32 0.0, %v173
    %v175 = vpop.f32.mrb[0].mxu0
    %176 = vmatprep.mubr.bf16.mxu0 0
    %177 = vmatmul.mubr.bf16.gmra.mrb[0].mxu0 %v101
    %v178 = vpop.f32.mrb[0].mxu0
    %v179 = vadd.f32 0.0, %v178
    %v180 = vpop.f32.mrb[0].mxu0
    %v181 = vpop.f32.mrb[0].mxu0
    %v182 = vadd.f32 0.0, %v181
    %v183 = vpop.f32.mrb[0].mxu0
    %184 = vmatprep.mubr.bf16.mxu0 0
    %185 = vmatmul.mubr.bf16.gmra.mrb[0].mxu0 %v104
    %v186 = vpop.f32.mrb[0].mxu0
    %v187 = vadd.f32 0.0, %v186
    %v188 = vpop.f32.mrb[0].mxu0
    %v189 = vpop.f32.mrb[0].mxu0
    %v190 = vadd.f32 0.0, %v189
    %v191 = vpop.f32.mrb[0].mxu0
    %192 = vmatprep.mubr.bf16.mxu0 0
    %193 = vmatmul.mubr.bf16.gmra.mrb[0].mxu0 %v107
    %v194 = vpop.f32.mrb[0].mxu0
    %v195 = vadd.f32 0.0, %v194
    %v196 = vpop.f32.mrb[0].mxu0
    %v197 = vpop.f32.mrb[0].mxu0
    %v198 = vadd.f32 0.0, %v197
    %v199 = vpop.f32.mrb[0].mxu0
    %200 = vmatprep.mubr.bf16.mxu0 0
    %201 = vmatmul.mubr.bf16.gmra.mrb[0].mxu0 %v110
    %v202 = vpop.f32.mrb[0].mxu0
    %v203 = vadd.f32 0.0, %v202
    %v204 = vpop.f32.mrb[0].mxu0
    %v205 = vpop.f32.mrb[0].mxu0
    %v206 = vadd.f32 0.0, %v205
    %v207 = vpop.f32.mrb[0].mxu0
    %208 = vdwg.mxu0
    %v209 = vld [vmem:[#allocation5] sm:$0xff]
    %v210 = vld [vmem:[#allocation5 + $0x8] sm:$0xff]
    %v211 = vld [vmem:[#allocation5 + $0x10] sm:$0xff]
    %v212 = vld [vmem:[#allocation5 + $0x18] sm:$0xff]
    %v213 = vld [vmem:[#allocation5 + $0x20] sm:$0xff]
    %v214 = vld [vmem:[#allocation5 + $0x28] sm:$0xff]
    %v215 = vld [vmem:[#allocation5 + $0x30] sm:$0xff]
    %v216 = vld [vmem:[#allocation5 + $0x38] sm:$0xff]
    %v217 = vld [vmem:[#allocation5 + $0x40] sm:$0xff]
    %v218 = vld [vmem:[#allocation5 + $0x48] sm:$0xff]
    %v219 = vld [vmem:[#allocation5 + $0x50] sm:$0xff]
    %v220 = vld [vmem:[#allocation5 + $0x58] sm:$0xff]
    %v221 = vld [vmem:[#allocation5 + $0x60] sm:$0xff]
    %v222 = vld [vmem:[#allocation5 + $0x68] sm:$0xff]
    %v223 = vld [vmem:[#allocation5 + $0x70] sm:$0xff]
    %v224 = vld [vmem:[#allocation5 + $0x78] sm:$0xff]
    %vm225 = vcmask 130048
    %v226 = vsel %vm225, %v209, -inf
    %227 = vmax.xlane.f32.xlu0 %v226
    %v228 = vpop.xlane.xlu0 %227
    %v229 = vsel %vm225, %v210, -inf
    %230 = vmax.xlane.f32.xlu0 %v229
    %v231 = vpop.xlane.xlu0 %230
    %v232 = vsel %vm225, %v211, -inf
    %233 = vmax.xlane.f32.xlu0 %v232
    %v234 = vpop.xlane.xlu0 %233
    %v235 = vsel %vm225, %v212, -inf
    %236 = vmax.xlane.f32.xlu0 %v235
    %v237 = vpop.xlane.xlu0 %236
    %v238 = vsel %vm225, %v213, -inf
    %239 = vmax.xlane.f32.xlu0 %v238
    %v240 = vpop.xlane.xlu0 %239
    %v241 = vsel %vm225, %v214, -inf
    %242 = vmax.xlane.f32.xlu0 %v241
    %v243 = vpop.xlane.xlu0 %242
    %v244 = vsel %vm225, %v215, -inf
    %245 = vmax.xlane.f32.xlu0 %v244
    %v246 = vpop.xlane.xlu0 %245
    %v247 = vsel %vm225, %v216, -inf
    %248 = vmax.xlane.f32.xlu0 %v247
    %v249 = vpop.xlane.xlu0 %248
    %v250 = vsel %vm225, %v217, -inf
    %251 = vmax.xlane.f32.xlu0 %v250
    %v252 = vpop.xlane.xlu0 %251
    %v253 = vsel %vm225, %v218, -inf
    %254 = vmax.xlane.f32.xlu0 %v253
    %v255 = vpop.xlane.xlu0 %254
    %v256 = vsel %vm225, %v219, -inf
    %257 = vmax.xlane.f32.xlu0 %v256
    %v258 = vpop.xlane.xlu0 %257
    %v259 = vsel %vm225, %v220, -inf
    %260 = vmax.xlane.f32.xlu0 %v259
    %v261 = vpop.xlane.xlu0 %260
    %v262 = vsel %vm225, %v221, -inf
    %263 = vmax.xlane.f32.xlu0 %v262
    %v264 = vpop.xlane.xlu0 %263
    %v265 = vsel %vm225, %v222, -inf
    %266 = vmax.xlane.f32.xlu0 %v265
    %v267 = vpop.xlane.xlu0 %266
    %v268 = vsel %vm225, %v223, -inf
    %269 = vmax.xlane.f32.xlu0 %v268
    %v270 = vpop.xlane.xlu0 %269
    %v271 = vsel %vm225, %v224, -inf
    %272 = vmax.xlane.f32.xlu0 %v271
    %v273 = vpop.xlane.xlu0 %272
    %v274 = vsub.f32 %v209, %v228
    %v275 = vsub.f32 %v210, %v231
    %v276 = vsub.f32 %v211, %v234
    %v277 = vsub.f32 %v212, %v237
    %v278 = vsub.f32 %v213, %v240
    %v279 = vsub.f32 %v214, %v243
    %v280 = vsub.f32 %v215, %v246
    %v281 = vsub.f32 %v216, %v249
    %v282 = vsub.f32 %v217, %v252
    %v283 = vsub.f32 %v218, %v255
    %v284 = vsub.f32 %v219, %v258
    %v285 = vsub.f32 %v220, %v261
    %v286 = vsub.f32 %v221, %v264
    %v287 = vsub.f32 %v222, %v267
    %v288 = vsub.f32 %v223, %v270
    %v289 = vsub.f32 %v224, %v273
    %v290 = vmul.f32 %v274, 1.442695
    %v291 = vpow.pop %v290
    %v292 = vmul.f32 %v275, 1.442695
    %v293 = vpow.pop %v292
    %v294 = vmul.f32 %v276, 1.442695
    %v295 = vpow.pop %v294
    %v296 = vmul.f32 %v277, 1.442695
    %v297 = vpow.pop %v296
    %v298 = vmul.f32 %v278, 1.442695
    %v299 = vpow.pop %v298
    %v300 = vmul.f32 %v279, 1.442695
    %v301 = vpow.pop %v300
    %v302 = vmul.f32 %v280, 1.442695
    %v303 = vpow.pop %v302
    %v304 = vmul.f32 %v281, 1.442695
    %v305 = vpow.pop %v304
    %v306 = vmul.f32 %v282, 1.442695
    %v307 = vpow.pop %v306
    %v308 = vmul.f32 %v283, 1.442695
    %v309 = vpow.pop %v308
    %v310 = vmul.f32 %v284, 1.442695
    %v311 = vpow.pop %v310
    %v312 = vmul.f32 %v285, 1.442695
    %v313 = vpow.pop %v312
    %v314 = vmul.f32 %v286, 1.442695
    %v315 = vpow.pop %v314
    %v316 = vmul.f32 %v287, 1.442695
    %v317 = vpow.pop %v316
    %v318 = vmul.f32 %v288, 1.442695
    %v319 = vpow.pop %v318
    %v320 = vmul.f32 %v289, 1.442695
    %v321 = vpow.pop %v320
    %v322 = vsel %vm225, %v291, 0.0
    %323 = vadd.xlane.f32.xlu0 %v322
    %v324 = vpop.xlane.xlu0 %323
    %v325 = vsel %vm225, %v293, 0.0
    %326 = vadd.xlane.f32.xlu0 %v325
    %v327 = vpop.xlane.xlu0 %326
    %v328 = vsel %vm225, %v295, 0.0
    %329 = vadd.xlane.f32.xlu0 %v328
    %v330 = vpop.xlane.xlu0 %329
    %v331 = vsel %vm225, %v297, 0.0
    %332 = vadd.xlane.f32.xlu0 %v331
    %v333 = vpop.xlane.xlu0 %332
    %v334 = vsel %vm225, %v299, 0.0
    %335 = vadd.xlane.f32.xlu0 %v334
    %v336 = vpop.xlane.xlu0 %335
    %v337 = vsel %vm225, %v301, 0.0
    %338 = vadd.xlane.f32.xlu0 %v337
    %v339 = vpop.xlane.xlu0 %338
    %v340 = vsel %vm225, %v303, 0.0
    %341 = vadd.xlane.f32.xlu0 %v340
    %v342 = vpop.xlane.xlu0 %341
    %v343 = vsel %vm225, %v305, 0.0
    %344 = vadd.xlane.f32.xlu0 %v343
    %v345 = vpop.xlane.xlu0 %344
    %v346 = vsel %vm225, %v307, 0.0
    %347 = vadd.xlane.f32.xlu0 %v346
    %v348 = vpop.xlane.xlu0 %347
    %v349 = vsel %vm225, %v309, 0.0
    %350 = vadd.xlane.f32.xlu0 %v349
    %v351 = vpop.xlane.xlu0 %350
    %v352 = vsel %vm225, %v311, 0.0
    %353 = vadd.xlane.f32.xlu0 %v352
    %v354 = vpop.xlane.xlu0 %353
    %v355 = vsel %vm225, %v313, 0.0
    %356 = vadd.xlane.f32.xlu0 %v355
    %v357 = vpop.xlane.xlu0 %356
    %v358 = vsel %vm225, %v315, 0.0
    %359 = vadd.xlane.f32.xlu0 %v358
    %v360 = vpop.xlane.xlu0 %359
    %v361 = vsel %vm225, %v317, 0.0
    %362 = vadd.xlane.f32.xlu0 %v361
    %v363 = vpop.xlane.xlu0 %362
    %v364 = vsel %vm225, %v319, 0.0
    %365 = vadd.xlane.f32.xlu0 %v364
    %v366 = vpop.xlane.xlu0 %365
    %v367 = vsel %vm225, %v321, 0.0
    %368 = vadd.xlane.f32.xlu0 %v367
    %v369 = vpop.xlane.xlu0 %368
    %v370 = vpack.c.bf16 %v293, %v291
    %v371 = vpack.c.bf16 %v297, %v295
    %v372 = vpack.c.bf16 %v301, %v299
    %v373 = vpack.c.bf16 %v305, %v303
    %v374 = vpack.c.bf16 %v309, %v307
    %v375 = vpack.c.bf16 %v313, %v311
    %v376 = vpack.c.bf16 %v317, %v315
    %v377 = vpack.c.bf16 %v321, %v319
    %v378 = vpack.c.bf16 %v150, %v147
    %v379 = vpack.c.bf16 %v158, %v155
    %v380 = vpack.c.bf16 %v166, %v163
    %v381 = vpack.c.bf16 %v174, %v171
    %v382 = vpack.c.bf16 %v182, %v179
    %v383 = vpack.c.bf16 %v190, %v187
    %v384 = vpack.c.bf16 %v198, %v195
    %v385 = vpack.c.bf16 %v206, %v203
    %v387 = vsel %vm225, %v370, 0
    %389 = vmatprep.subr.bf16.mxu0 0
    %390 = vmatpush1.bf16.msra.mxu0 %v378
    %391 = vmatprep.subr.bf16.mxu0 0
    %392 = vmatpush1.bf16.msra.mxu0 0
    %393 = vmatprep.subr.bf16.mxu0 0
    %394 = vmatpush1.bf16.msra.mxu0 0
    %395 = vmatprep.subr.bf16.mxu0 0
    %396 = vmatpush1.bf16.msra.mxu0 0
    %397 = vmatprep.subr.bf16.mxu0 0
    %398 = vmatpush1.bf16.msra.mxu0 0
    %399 = vmatprep.subr.bf16.mxu0 0
    %400 = vmatpush1.bf16.msra.mxu0 0
    %401 = vmatprep.subr.bf16.mxu0 0
    %402 = vmatpush1.bf16.msra.mxu0 0
    %403 = vmatprep.subr.bf16.mxu0 0
    %404 = vmatpush1.bf16.msra.mxu0 0
    %405 = vmatprep.subr.bf16.mxu0 0
    %406 = vmatpush1.bf16.msra.mxu0 0
    %407 = vmatprep.subr.bf16.mxu0 0
    %408 = vmatpush1.bf16.msra.mxu0 0
    %409 = vmatprep.subr.bf16.mxu0 0
    %410 = vmatpush1.bf16.msra.mxu0 0
    %411 = vmatprep.subr.bf16.mxu0 0
    %412 = vmatpush1.bf16.msra.mxu0 0
    %413 = vmatprep.subr.bf16.mxu0 0
    %414 = vmatpush1.bf16.msra.mxu0 0
    %415 = vmatprep.subr.bf16.mxu0 0
    %416 = vmatpush1.bf16.msra.mxu0 0
    %417 = vmatprep.subr.bf16.mxu0 0
    %418 = vmatpush1.bf16.msra.mxu0 0
    %419 = vmatprep.subr.bf16.mxu0 0
    %420 = vmatpush1.bf16.msra.mxu0 0
    %421 = vmatprep.mubr.bf16.mxu0 0
    %422 = vmatmul.mubr.bf16.gmra.mrb[0].mxu0 %v387
    %v423 = vpop.f32.mrb[0].mxu0
    %v424 = vadd.f32 0.0, %v423
    %v425 = vpop.f32.mrb[0].mxu0
    %v426 = vpop.f32.mrb[0].mxu0
    %v427 = vadd.f32 0.0, %v426
    %v428 = vpop.f32.mrb[0].mxu0
    %429 = vdwg.mxu0
    %v431 = vsel %vm225, %v371, 0
    %433 = vmatprep.subr.bf16.mxu0 0
    %434 = vmatpush1.bf16.msra.mxu0 %v379
    %435 = vmatprep.subr.bf16.mxu0 0
    %436 = vmatpush1.bf16.msra.mxu0 0
    %437 = vmatprep.subr.bf16.mxu0 0
    %438 = vmatpush1.bf16.msra.mxu0 0
    %439 = vmatprep.subr.bf16.mxu0 0
    %440 = vmatpush1.bf16.msra.mxu0 0
    %441 = vmatprep.subr.bf16.mxu0 0
    %442 = vmatpush1.bf16.msra.mxu0 0
    %443 = vmatprep.subr.bf16.mxu0 0
    %444 = vmatpush1.bf16.msra.mxu0 0
    %445 = vmatprep.subr.bf16.mxu0 0
    %446 = vmatpush1.bf16.msra.mxu0 0
    %447 = vmatprep.subr.bf16.mxu0 0
    %448 = vmatpush1.bf16.msra.mxu0 0
    %449 = vmatprep.subr.bf16.mxu0 0
    %450 = vmatpush1.bf16.msra.mxu0 0
    %451 = vmatprep.subr.bf16.mxu0 0
    %452 = vmatpush1.bf16.msra.mxu0 0
    %453 = vmatprep.subr.bf16.mxu0 0
    %454 = vmatpush1.bf16.msra.mxu0 0
    %455 = vmatprep.subr.bf16.mxu0 0
    %456 = vmatpush1.bf16.msra.mxu0 0
    %457 = vmatprep.subr.bf16.mxu0 0
    %458 = vmatpush1.bf16.msra.mxu0 0
    %459 = vmatprep.subr.bf16.mxu0 0
    %460 = vmatpush1.bf16.msra.mxu0 0
    %461 = vmatprep.subr.bf16.mxu0 0
    %462 = vmatpush1.bf16.msra.mxu0 0
    %463 = vmatprep.subr.bf16.mxu0 0
    %464 = vmatpush1.bf16.msra.mxu0 0
    %465 = vmatprep.mubr.bf16.mxu0 0
    %466 = vmatmul.mubr.bf16.gmra.mrb[0].mxu0 %v431
    %v467 = vpop.f32.mrb[0].mxu0
    %v468 = vadd.f32 0.0, %v467
    %v469 = vpop.f32.mrb[0].mxu0
    %v470 = vpop.f32.mrb[0].mxu0
    %v471 = vadd.f32 0.0, %v470
    %v472 = vpop.f32.mrb[0].mxu0
    %473 = vdwg.mxu0
    %v475 = vsel %vm225, %v372, 0
    %477 = vmatprep.subr.bf16.mxu0 0
    %478 = vmatpush1.bf16.msra.mxu0 %v380
    %479 = vmatprep.subr.bf16.mxu0 0
    %480 = vmatpush1.bf16.msra.mxu0 0
    %481 = vmatprep.subr.bf16.mxu0 0
    %482 = vmatpush1.bf16.msra.mxu0 0
    %483 = vmatprep.subr.bf16.mxu0 0
    %484 = vmatpush1.bf16.msra.mxu0 0
    %485 = vmatprep.subr.bf16.mxu0 0
    %486 = vmatpush1.bf16.msra.mxu0 0
    %487 = vmatprep.subr.bf16.mxu0 0
    %488 = vmatpush1.bf16.msra.mxu0 0
    %489 = vmatprep.subr.bf16.mxu0 0
    %490 = vmatpush1.bf16.msra.mxu0 0
    %491 = vmatprep.subr.bf16.mxu0 0
    %492 = vmatpush1.bf16.msra.mxu0 0
    %493 = vmatprep.subr.bf16.mxu0 0
    %494 = vmatpush1.bf16.msra.mxu0 0
    %495 = vmatprep.subr.bf16.mxu0 0
    %496 = vmatpush1.bf16.msra.mxu0 0
    %497 = vmatprep.subr.bf16.mxu0 0
    %498 = vmatpush1.bf16.msra.mxu0 0
    %499 = vmatprep.subr.bf16.mxu0 0
    %500 = vmatpush1.bf16.msra.mxu0 0
    %501 = vmatprep.subr.bf16.mxu0 0
    %502 = vmatpush1.bf16.msra.mxu0 0
    %503 = vmatprep.subr.bf16.mxu0 0
    %504 = vmatpush1.bf16.msra.mxu0 0
    %505 = vmatprep.subr.bf16.mxu0 0
    %506 = vmatpush1.bf16.msra.mxu0 0
    %507 = vmatprep.subr.bf16.mxu0 0
    %508 = vmatpush1.bf16.msra.mxu0 0
    %509 = vmatprep.mubr.bf16.mxu0 0
    %510 = vmatmul.mubr.bf16.gmra.mrb[0].mxu0 %v475
    %v511 = vpop.f32.mrb[0].mxu0
    %v512 = vadd.f32 0.0, %v511
    %v513 = vpop.f32.mrb[0].mxu0
    %v514 = vpop.f32.mrb[0].mxu0
    %v515 = vadd.f32 0.0, %v514
    %v516 = vpop.f32.mrb[0].mxu0
    %517 = vdwg.mxu0
    %v519 = vsel %vm225, %v373, 0
    %521 = vmatprep.subr.bf16.mxu0 0
    %522 = vmatpush1.bf16.msra.mxu0 %v381
    %523 = vmatprep.subr.bf16.mxu0 0
    %524 = vmatpush1.bf16.msra.mxu0 0
    %525 = vmatprep.subr.bf16.mxu0 0
    %526 = vmatpush1.bf16.msra.mxu0 0
    %527 = vmatprep.subr.bf16.mxu0 0
    %528 = vmatpush1.bf16.msra.mxu0 0
    %529 = vmatprep.subr.bf16.mxu0 0
    %530 = vmatpush1.bf16.msra.mxu0 0
    %531 = vmatprep.subr.bf16.mxu0 0
    %532 = vmatpush1.bf16.msra.mxu0 0
    %533 = vmatprep.subr.bf16.mxu0 0
    %534 = vmatpush1.bf16.msra.mxu0 0
    %535 = vmatprep.subr.bf16.mxu0 0
    %536 = vmatpush1.bf16.msra.mxu0 0
    %537 = vmatprep.subr.bf16.mxu0 0
    %538 = vmatpush1.bf16.msra.mxu0 0
    %539 = vmatprep.subr.bf16.mxu0 0
    %540 = vmatpush1.bf16.msra.mxu0 0
    %541 = vmatprep.subr.bf16.mxu0 0
    %542 = vmatpush1.bf16.msra.mxu0 0
    %543 = vmatprep.subr.bf16.mxu0 0
    %544 = vmatpush1.bf16.msra.mxu0 0
    %545 = vmatprep.subr.bf16.mxu0 0
    %546 = vmatpush1.bf16.msra.mxu0 0
    %547 = vmatprep.subr.bf16.mxu0 0
    %548 = vmatpush1.bf16.msra.mxu0 0
    %549 = vmatprep.subr.bf16.mxu0 0
    %550 = vmatpush1.bf16.msra.mxu0 0
    %551 = vmatprep.subr.bf16.mxu0 0
    %552 = vmatpush1.bf16.msra.mxu0 0
    %553 = vmatprep.mubr.bf16.mxu0 0
    %554 = vmatmul.mubr.bf16.gmra.mrb[0].mxu0 %v519
    %v555 = vpop.f32.mrb[0].mxu0
    %v556 = vadd.f32 0.0, %v555
    %v557 = vpop.f32.mrb[0].mxu0
    %v558 = vpop.f32.mrb[0].mxu0
    %v559 = vadd.f32 0.0, %v558
    %v560 = vpop.f32.mrb[0].mxu0
    %561 = vdwg.mxu0
    %v563 = vsel %vm225, %v374, 0
    %565 = vmatprep.subr.bf16.mxu0 0
    %566 = vmatpush1.bf16.msra.mxu0 %v382
    %567 = vmatprep.subr.bf16.mxu0 0
    %568 = vmatpush1.bf16.msra.mxu0 0
    %569 = vmatprep.subr.bf16.mxu0 0
    %570 = vmatpush1.bf16.msra.mxu0 0
    %571 = vmatprep.subr.bf16.mxu0 0
    %572 = vmatpush1.bf16.msra.mxu0 0
    %573 = vmatprep.subr.bf16.mxu0 0
    %574 = vmatpush1.bf16.msra.mxu0 0
    %575 = vmatprep.subr.bf16.mxu0 0
    %576 = vmatpush1.bf16.msra.mxu0 0
    %577 = vmatprep.subr.bf16.mxu0 0
    %578 = vmatpush1.bf16.msra.mxu0 0
    %579 = vmatprep.subr.bf16.mxu0 0
    %580 = vmatpush1.bf16.msra.mxu0 0
    %581 = vmatprep.subr.bf16.mxu0 0
    %582 = vmatpush1.bf16.msra.mxu0 0
    %583 = vmatprep.subr.bf16.mxu0 0
    %584 = vmatpush1.bf16.msra.mxu0 0
    %585 = vmatprep.subr.bf16.mxu0 0
    %586 = vmatpush1.bf16.msra.mxu0 0
    %587 = vmatprep.subr.bf16.mxu0 0
    %588 = vmatpush1.bf16.msra.mxu0 0
    %589 = vmatprep.subr.bf16.mxu0 0
    %590 = vmatpush1.bf16.msra.mxu0 0
    %591 = vmatprep.subr.bf16.mxu0 0
    %592 = vmatpush1.bf16.msra.mxu0 0
    %593 = vmatprep.subr.bf16.mxu0 0
    %594 = vmatpush1.bf16.msra.mxu0 0
    %595 = vmatprep.subr.bf16.mxu0 0
    %596 = vmatpush1.bf16.msra.mxu0 0
    %597 = vmatprep.mubr.bf16.mxu0 0
    %598 = vmatmul.mubr.bf16.gmra.mrb[0].mxu0 %v563
    %v599 = vpop.f32.mrb[0].mxu0
    %v600 = vadd.f32 0.0, %v599
    %v601 = vpop.f32.mrb[0].mxu0
    %v602 = vpop.f32.mrb[0].mxu0
    %v603 = vadd.f32 0.0, %v602
    %v604 = vpop.f32.mrb[0].mxu0
    %605 = vdwg.mxu0
    %v607 = vsel %vm225, %v375, 0
    %609 = vmatprep.subr.bf16.mxu0 0
    %610 = vmatpush1.bf16.msra.mxu0 %v383
    %611 = vmatprep.subr.bf16.mxu0 0
    %612 = vmatpush1.bf16.msra.mxu0 0
    %613 = vmatprep.subr.bf16.mxu0 0
    %614 = vmatpush1.bf16.msra.mxu0 0
    %615 = vmatprep.subr.bf16.mxu0 0
    %616 = vmatpush1.bf16.msra.mxu0 0
    %617 = vmatprep.subr.bf16.mxu0 0
    %618 = vmatpush1.bf16.msra.mxu0 0
    %619 = vmatprep.subr.bf16.mxu0 0
    %620 = vmatpush1.bf16.msra.mxu0 0
    %621 = vmatprep.subr.bf16.mxu0 0
    %622 = vmatpush1.bf16.msra.mxu0 0
    %623 = vmatprep.subr.bf16.mxu0 0
    %624 = vmatpush1.bf16.msra.mxu0 0
    %625 = vmatprep.subr.bf16.mxu0 0
    %626 = vmatpush1.bf16.msra.mxu0 0
    %627 = vmatprep.subr.bf16.mxu0 0
    %628 = vmatpush1.bf16.msra.mxu0 0
    %629 = vmatprep.subr.bf16.mxu0 0
    %630 = vmatpush1.bf16.msra.mxu0 0
    %631 = vmatprep.subr.bf16.mxu0 0
    %632 = vmatpush1.bf16.msra.mxu0 0
    %633 = vmatprep.subr.bf16.mxu0 0
    %634 = vmatpush1.bf16.msra.mxu0 0
    %635 = vmatprep.subr.bf16.mxu0 0
    %636 = vmatpush1.bf16.msra.mxu0 0
    %637 = vmatprep.subr.bf16.mxu0 0
    %638 = vmatpush1.bf16.msra.mxu0 0
    %639 = vmatprep.subr.bf16.mxu0 0
    %640 = vmatpush1.bf16.msra.mxu0 0
    %641 = vmatprep.mubr.bf16.mxu0 0
    %642 = vmatmul.mubr.bf16.gmra.mrb[0].mxu0 %v607
    %v643 = vpop.f32.mrb[0].mxu0
    %v644 = vadd.f32 0.0, %v643
    %v645 = vpop.f32.mrb[0].mxu0
    %v646 = vpop.f32.mrb[0].mxu0
    %v647 = vadd.f32 0.0, %v646
    %v648 = vpop.f32.mrb[0].mxu0
    %649 = vdwg.mxu0
    %v651 = vsel %vm225, %v376, 0
    %653 = vmatprep.subr.bf16.mxu0 0
    %654 = vmatpush1.bf16.msra.mxu0 %v384
    %655 = vmatprep.subr.bf16.mxu0 0
    %656 = vmatpush1.bf16.msra.mxu0 0
    %657 = vmatprep.subr.bf16.mxu0 0
    %658 = vmatpush1.bf16.msra.mxu0 0
    %659 = vmatprep.subr.bf16.mxu0 0
    %660 = vmatpush1.bf16.msra.mxu0 0
    %661 = vmatprep.subr.bf16.mxu0 0
    %662 = vmatpush1.bf16.msra.mxu0 0
    %663 = vmatprep.subr.bf16.mxu0 0
    %664 = vmatpush1.bf16.msra.mxu0 0
    %665 = vmatprep.subr.bf16.mxu0 0
    %666 = vmatpush1.bf16.msra.mxu0 0
    %667 = vmatprep.subr.bf16.mxu0 0
    %668 = vmatpush1.bf16.msra.mxu0 0
    %669 = vmatprep.subr.bf16.mxu0 0
    %670 = vmatpush1.bf16.msra.mxu0 0
    %671 = vmatprep.subr.bf16.mxu0 0
    %672 = vmatpush1.bf16.msra.mxu0 0
    %673 = vmatprep.subr.bf16.mxu0 0
    %674 = vmatpush1.bf16.msra.mxu0 0
    %675 = vmatprep.subr.bf16.mxu0 0
    %676 = vmatpush1.bf16.msra.mxu0 0
    %677 = vmatprep.subr.bf16.mxu0 0
    %678 = vmatpush1.bf16.msra.mxu0 0
    %679 = vmatprep.subr.bf16.mxu0 0
    %680 = vmatpush1.bf16.msra.mxu0 0
    %681 = vmatprep.subr.bf16.mxu0 0
    %682 = vmatpush1.bf16.msra.mxu0 0
    %683 = vmatprep.subr.bf16.mxu0 0
    %684 = vmatpush1.bf16.msra.mxu0 0
    %685 = vmatprep.mubr.bf16.mxu0 0
    %686 = vmatmul.mubr.bf16.gmra.mrb[0].mxu0 %v651
    %v687 = vpop.f32.mrb[0].mxu0
    %v688 = vadd.f32 0.0, %v687
    %v689 = vpop.f32.mrb[0].mxu0
    %v690 = vpop.f32.mrb[0].mxu0
    %v691 = vadd.f32 0.0, %v690
    %v692 = vpop.f32.mrb[0].mxu0
    %693 = vdwg.mxu0
    %v695 = vsel %vm225, %v377, 0
    %697 = vmatprep.subr.bf16.mxu0 0
    %698 = vmatpush1.bf16.msra.mxu0 %v385
    %699 = vmatprep.subr.bf16.mxu0 0
    %700 = vmatpush1.bf16.msra.mxu0 0
    %701 = vmatprep.subr.bf16.mxu0 0
    %702 = vmatpush1.bf16.msra.mxu0 0
    %703 = vmatprep.subr.bf16.mxu0 0
    %704 = vmatpush1.bf16.msra.mxu0 0
    %705 = vmatprep.subr.bf16.mxu0 0
    %706 = vmatpush1.bf16.msra.mxu0 0
    %707 = vmatprep.subr.bf16.mxu0 0
    %708 = vmatpush1.bf16.msra.mxu0 0
    %709 = vmatprep.subr.bf16.mxu0 0
    %710 = vmatpush1.bf16.msra.mxu0 0
    %711 = vmatprep.subr.bf16.mxu0 0
    %712 = vmatpush1.bf16.msra.mxu0 0
    %713 = vmatprep.subr.bf16.mxu0 0
    %714 = vmatpush1.bf16.msra.mxu0 0
    %715 = vmatprep.subr.bf16.mxu0 0
    %716 = vmatpush1.bf16.msra.mxu0 0
    %717 = vmatprep.subr.bf16.mxu0 0
    %718 = vmatpush1.bf16.msra.mxu0 0
    %719 = vmatprep.subr.bf16.mxu0 0
    %720 = vmatpush1.bf16.msra.mxu0 0
    %721 = vmatprep.subr.bf16.mxu0 0
    %722 = vmatpush1.bf16.msra.mxu0 0
    %723 = vmatprep.subr.bf16.mxu0 0
    %724 = vmatpush1.bf16.msra.mxu0 0
    %725 = vmatprep.subr.bf16.mxu0 0
    %726 = vmatpush1.bf16.msra.mxu0 0
    %727 = vmatprep.subr.bf16.mxu0 0
    %728 = vmatpush1.bf16.msra.mxu0 0
    %729 = vmatprep.mubr.bf16.mxu0 0
    %730 = vmatmul.mubr.bf16.gmra.mrb[0].mxu0 %v695
    %v731 = vpop.f32.mrb[0].mxu0
    %v732 = vadd.f32 0.0, %v731
    %v733 = vpop.f32.mrb[0].mxu0
    %v734 = vpop.f32.mrb[0].mxu0
    %v735 = vadd.f32 0.0, %v734
    %v736 = vpop.f32.mrb[0].mxu0
    %737 = vdwg.mxu0
    %v738 = vrcp.pop %v324
    %v739 = vmul.f32 1.0, %v738
    %v740 = vrcp.pop %v327
    %v741 = vmul.f32 1.0, %v740
    %v742 = vrcp.pop %v330
    %v743 = vmul.f32 1.0, %v742
    %v744 = vrcp.pop %v333
    %v745 = vmul.f32 1.0, %v744
    %v746 = vrcp.pop %v336
    %v747 = vmul.f32 1.0, %v746
    %v748 = vrcp.pop %v339
    %v749 = vmul.f32 1.0, %v748
    %v750 = vrcp.pop %v342
    %v751 = vmul.f32 1.0, %v750
    %v752 = vrcp.pop %v345
    %v753 = vmul.f32 1.0, %v752
    %v754 = vrcp.pop %v348
    %v755 = vmul.f32 1.0, %v754
    %v756 = vrcp.pop %v351
    %v757 = vmul.f32 1.0, %v756
    %v758 = vrcp.pop %v354
    %v759 = vmul.f32 1.0, %v758
    %v760 = vrcp.pop %v357
    %v761 = vmul.f32 1.0, %v760
    %v762 = vrcp.pop %v360
    %v763 = vmul.f32 1.0, %v762
    %v764 = vrcp.pop %v363
    %v765 = vmul.f32 1.0, %v764
    %v766 = vrcp.pop %v366
    %v767 = vmul.f32 1.0, %v766
    %v768 = vrcp.pop %v369
    %v769 = vmul.f32 1.0, %v768
    %v770 = vmul.f32 %v424, %v739
    %v771 = vmul.f32 %v427, %v741
    %v772 = vmul.f32 %v468, %v743
    %v773 = vmul.f32 %v471, %v745
    %v774 = vmul.f32 %v512, %v747
    %v775 = vmul.f32 %v515, %v749
    %v776 = vmul.f32 %v556, %v751
    %v777 = vmul.f32 %v559, %v753
    %v778 = vmul.f32 %v600, %v755
    %v779 = vmul.f32 %v603, %v757
    %v780 = vmul.f32 %v644, %v759
    %v781 = vmul.f32 %v647, %v761
    %v782 = vmul.f32 %v688, %v763
    %v783 = vmul.f32 %v691, %v765
    %v784 = vmul.f32 %v732, %v767
    %v785 = vmul.f32 %v735, %v769
    %786 = vst [vmem:[#allocation8] sm:$0xff] %v770
    %787 = vst [vmem:[#allocation8 + $0x8] sm:$0xff] %v771
    %788 = vst [vmem:[#allocation8 + $0x10] sm:$0xff] %v772
    %789 = vst [vmem:[#allocation8 + $0x18] sm:$0xff] %v773
    %790 = vst [vmem:[#allocation8 + $0x20] sm:$0xff] %v774
    %791 = vst [vmem:[#allocation8 + $0x28] sm:$0xff] %v775
    %792 = vst [vmem:[#allocation8 + $0x30] sm:$0xff] %v776
    %793 = vst [vmem:[#allocation8 + $0x38] sm:$0xff] %v777
    %794 = vst [vmem:[#allocation8 + $0x40] sm:$0xff] %v778
    %795 = vst [vmem:[#allocation8 + $0x48] sm:$0xff] %v779
    %796 = vst [vmem:[#allocation8 + $0x50] sm:$0xff] %v780
    %797 = vst [vmem:[#allocation8 + $0x58] sm:$0xff] %v781
    %798 = vst [vmem:[#allocation8 + $0x60] sm:$0xff] %v782
    %799 = vst [vmem:[#allocation8 + $0x68] sm:$0xff] %v783
    %800 = vst [vmem:[#allocation8 + $0x70] sm:$0xff] %v784
    %801 = vst [vmem:[#allocation8 + $0x78] sm:$0xff] %v785
    // Predicated region
    $region26: #{tpu_custom_call.1} parent=1 // pred_check
      _
    $region27: #{tpu_custom_call.1} parent=1 // pred_check_branch
      %803 = sbr.rel (0) target = $region29
    $region28: #{tpu_custom_call.1} parent=1 // pred_region
      %s805 = ssub.s32 2048, 2048
      %806 = vsyncadd [#allocation4], %s805
      %s807 = sshll.u32 [#allocation8], 4
      %s808 = int_to_ptr.vmem [resolvable:$true] %s807
      %813 = dma.vmem_to_hbm [thread:$0]  %s808, 2048, %s3, [#allocation4], 128, 128, 8
    $region29: #{tpu_custom_call.1} parent=1 // pred_fallthru
      _
    // Predicated region
    $region30: #{tpu_custom_call.1} parent=1 // pred_check
      _
    $region31: #{tpu_custom_call.1} parent=1 // pred_check_branch
      %815 = sbr.rel (0) target = $region33
    $region32: #{tpu_custom_call.1} parent=1 // pred_region
      %816 = dma.done [#allocation4], 2048
    $region33: #{tpu_custom_call.1} parent=1 // pred_fallthru
      _
    %817 = vsyncpa [#allocation3], 1
    %818 = vsyncpa [#allocation6], 1
    %819 = vsyncpa [#allocation4], 1

</llo_original>
